<compile_context>
chip_gen: v7x
topology: tpu7x:2x2x1
jax: 0.10.0
libtpu: 0.0.40
codegen_flags: <defaults>
</compile_context>

<pallas_src>
import jax
import jax.numpy as jnp
from jax.experimental import pallas as pl
from jax.experimental.pallas import tpu as pltpu


def _round_up(x: int, m: int) -> int:
    return ((x + m - 1) // m) * m


def _fusion_kernel(x_ref, wb_ref, g_ref, p_ref, o_ref):
    """One tile of packed batch rows.

    x_ref  : [TMq, P*F]  P original batch rows packed per VMEM row (concat'd feats)
    wb_ref : [P*F, P*O]  block-diagonal projection weight (P copies of W)
    g_ref  : [P*O, P*O]  per-O-lane-group mean operator (1/O within a group)
    p_ref  : [3,   P*O]  rows = (bias, ln_gamma, ln_beta), each tiled P times
    o_ref  : [TMq, P*O]  lane-dense packed output
    """
    # Concat-fused, pack-fused projection: a single MXU matmul with the
    # block-diagonal weight produces P batch rows per output row.
    h = jnp.dot(x_ref[...], wb_ref[...], preferred_element_type=jnp.float32)

    params = p_ref[...].astype(jnp.float32)   # [3, P*O]
    bias = params[0:1, :]
    gamma = params[1:2, :]
    beta = params[2:3, :]
    h = h + bias

    # LayerNorm (torch eps=1e-5) per 32-lane group, all in f32.  The group-mean
    # matrix broadcasts each group's mean back across its own 32 lanes, so no
    # cross-lane reshapes/relayouts are needed.
    g = g_ref[...]
    mean = jnp.dot(h, g, preferred_element_type=jnp.float32)
    centered = h - mean
    var = jnp.dot(centered * centered, g, preferred_element_type=jnp.float32)
    y = centered * jax.lax.rsqrt(var + 1e-5) * gamma + beta

    # Dropout is identity at inference time.
    o_ref[...] = jnp.maximum(y, 0.0).astype(o_ref.dtype)


def multimodal_fusion_concat(features_list, w, b, gamma, beta, *, batch_tile=None):
    """features_list: list of [B, d_m] arrays; w: [sum(d_m), O]. Returns [B, O]."""
    B = int(features_list[0].shape[0])
    dims = [int(f.shape[1]) for f in features_list]
    F = sum(dims)
    assert w.shape[0] == F, "weight rows must equal sum of modality dims"
    O = int(w.shape[1])

    # Pack P batch rows per output row so stores are lane-dense (P*O == 128).
    P = 128 // O if (0 < O <= 128 and 128 % O == 0) else 1
    K = P * F
    N = P * O

    # Wrapper-side concat (tiny) + pad batch to a multiple of P + pack rows.
    x = jnp.concatenate([f.astype(jnp.float32) for f in features_list], axis=-1)
    B_pad = _round_up(B, P)
    if B_pad != B:
        x = jnp.pad(x, ((0, B_pad - B), (0, 0)))
    Bq = B_pad // P
    xq = x.reshape(Bq, K)

    # Block-diagonal weight: realizes the concat-projection for P packed rows.
    wf = w.astype(jnp.float32)
    wb = jnp.zeros((K, N), jnp.float32)
    for j in range(P):
        wb = wb.at[j * F:(j + 1) * F, j * O:(j + 1) * O].set(wf)

    # Group-mean operator and tiled (bias, gamma, beta) LN params.
    g = jnp.kron(jnp.eye(P, dtype=jnp.float32),
                 jnp.full((O, O), 1.0 / O, jnp.float32))
    params = jnp.stack([jnp.tile(b.astype(jnp.float32), P),
                        jnp.tile(gamma.astype(jnp.float32), P),
                        jnp.tile(beta.astype(jnp.float32), P)], axis=0)

    # Batch tile (in packed rows).  Large tiles amortize the ~0.35 us per-step
    # overhead; for mid/large batches force >= 2 grid steps so both v7x
    # TensorCores engage.  VMEM at TMq=256 is ~1.7 MB -> far below any limit.
    if batch_tile is None:
        TMQ_CAP = 256                      # 256 packed rows = P*256 batch rows
        if Bq <= 16:
            TMq = Bq
        else:
            TMq = min(TMQ_CAP, _round_up(pl.cdiv(Bq, 2), 8))
    else:
        TMq = max(1, int(batch_tile) // P)
        if TMq < Bq:
            TMq = _round_up(TMq, 8)
        TMq = min(TMq, Bq)
    grid = (pl.cdiv(Bq, TMq),)

    cost = pl.CostEstimate(
        flops=2 * Bq * K * N + 2 * (2 * Bq * N * N),
        transcendentals=Bq * N,
        bytes_accessed=(Bq * K + Bq * N) * 4 + (K * N + N * N + 3 * N) * 4,
    )

    out_q = pl.pallas_call(
        _fusion_kernel,
        out_shape=jax.ShapeDtypeStruct((Bq, N), jnp.float32),
        grid=grid,
        in_specs=[
            pl.BlockSpec((TMq, K), lambda i: (i, 0)),   # packed activations
            pl.BlockSpec((K, N), lambda i: (0, 0)),     # block-diag weight (resident)
            pl.BlockSpec((N, N), lambda i: (0, 0)),     # group-mean matrix (resident)
            pl.BlockSpec((3, N), lambda i: (0, 0)),     # bias/gamma/beta (resident)
        ],
        out_specs=pl.BlockSpec((TMq, N), lambda i: (i, 0)),
        compiler_params=pltpu.CompilerParams(
            dimension_semantics=("parallel",)),
        cost_estimate=cost,
    )(xq, wb, g, params)

    # Unpack: row-major reshape is layout-free; slice drops batch padding.
    out = out_q.reshape(B_pad, O)
    if B_pad != B:
        out = out[:B]
    return out


def _reference(features_list, w, b, gamma, beta):
    fused = jnp.concatenate(features_list, axis=-1)
    h = fused @ w + b
    mean = jnp.mean(h, axis=-1, keepdims=True)
    var = jnp.mean((h - mean) ** 2, axis=-1, keepdims=True)
    normed = (h - mean) / jnp.sqrt(var + 1e-5)
    return jnp.maximum(normed * gamma + beta, 0.0)


if __name__ == "__main__":
    # Module config: modality_dims = {'transcriptomics': 32, 'chemicals': 16,
    # 'imaging': 24}, output_dim = 32, strategy='concat', projection=True.
    modality_dims = {"transcriptomics": 32, "chemicals": 16, "imaging": 24}
    output_dim = 32
    fusion_dim = sum(modality_dims.values())  # 72

    key = jax.random.PRNGKey(0)
    k_t, k_c, k_i, k_w, k_b = jax.random.split(key, 5)

    def make_feats(keys, batch):
        return [
            jax.random.normal(keys[0], (batch, modality_dims["transcriptomics"]), jnp.float32),
            jax.random.normal(keys[1], (batch, modality_dims["chemicals"]), jnp.float32),
            jax.random.normal(keys[2], (batch, modality_dims["imaging"]), jnp.float32),
        ]

    # Deterministic synthetic params: proj Linear weight/bias, LN gamma=1, beta=0.
    w = jax.random.normal(k_w, (fusion_dim, output_dim), jnp.float32) * 0.05
    b = jax.random.normal(k_b, (output_dim,), jnp.float32) * 0.01
    gamma = jnp.ones((output_dim,), jnp.float32)
    beta = jnp.zeros((output_dim,), jnp.float32)

    # 1) Small batch: single grid step, batch divisible by the packing factor.
    feats = make_feats([k_t, k_c, k_i], 8)
    out = jax.block_until_ready(multimodal_fusion_concat(feats, w, b, gamma, beta))
    ref = _reference(feats, w, b, gamma, beta)
    assert out.shape == (8, output_dim)
    assert jnp.allclose(out, ref, atol=5e-4, rtol=5e-4), "mismatch vs reference (B=8)"

    # 2) Batch not divisible by the packing factor (exercises pad/slice path).
    keys2 = jax.random.split(jax.random.PRNGKey(1), 3)
    feats2 = make_feats(keys2, 6)
    out2 = jax.block_until_ready(multimodal_fusion_concat(feats2, w, b, gamma, beta))
    ref2 = _reference(feats2, w, b, gamma, beta)
    assert out2.shape == (6, output_dim)
    assert jnp.allclose(out2, ref2, atol=5e-4, rtol=5e-4), "mismatch vs reference (B=6)"

    # 3) Larger batch: multi-step parallel grid with a partial last tile.
    keys3 = jax.random.split(jax.random.PRNGKey(2), 3)
    feats3 = make_feats(keys3, 1000)
    out3 = jax.block_until_ready(multimodal_fusion_concat(feats3, w, b, gamma, beta))
    ref3 = _reference(feats3, w, b, gamma, beta)
    assert out3.shape == (1000, output_dim)
    assert jnp.allclose(out3, ref3, atol=5e-4, rtol=5e-4), "mismatch vs reference (B=1000)"

    # TODO(synk): dropout omitted (inference mode); hierarchical / weighted /
    # add / multiply strategy variants are config branches not exercised here.
    print("KERNEL_OK")
</pallas_src>

<mosaic_0001>
module attributes {stable_mosaic.version = 11 : i64} {
  func.func @_fusion_kernel(%arg0: i32, %arg1: memref<2x288xf32, #tpu.memory_space<vmem>>, %arg2: memref<288x128xf32, #tpu.memory_space<vmem>>, %arg3: memref<128x128xf32, #tpu.memory_space<vmem>>, %arg4: memref<3x128xf32, #tpu.memory_space<vmem>>, %arg5: memref<2x128xf32, #tpu.memory_space<vmem>>) attributes {dimension_semantics = [#tpu.dimension_semantics<parallel>], iteration_bounds = array<i64: 1>, scalar_prefetch = 0 : i64, scratch_operands = 0 : i64, tpu.core_type = #tpu.core_type<tc>, window_params = [{transform_indices = @transform_0, window_bounds = array<i64: 2, 288>}, {pipeline_mode = #tpu.pipeline_mode<synchronous>, transform_indices = @transform_1, window_bounds = array<i64: 288, 128>}, {pipeline_mode = #tpu.pipeline_mode<synchronous>, transform_indices = @transform_2, window_bounds = array<i64: 128, 128>}, {pipeline_mode = #tpu.pipeline_mode<synchronous>, transform_indices = @transform_3, window_bounds = array<i64: 3, 128>}, {transform_indices = @transform_4, window_bounds = array<i64: 2, 128>}]} {
    %c0 = arith.constant 0 : index
    %c0_0 = arith.constant 0 : index
    %0 = vector.load %arg1[%c0, %c0_0] : memref<2x288xf32, #tpu.memory_space<vmem>>, vector<2x288xf32>
    %c0_1 = arith.constant 0 : index
    %c0_2 = arith.constant 0 : index
    %1 = vector.load %arg2[%c0_1, %c0_2] : memref<288x128xf32, #tpu.memory_space<vmem>>, vector<288x128xf32>
    %cst = arith.constant dense<0.000000e+00> : vector<2x128xf32>
    %2 = tpu.matmul %0, %1, %cst {dimension_numbers = #tpu.dot_dimension_numbers<[1], [0], [0], [1], [0, 0, 1, 1], [], []>} : vector<2x288xf32>, vector<288x128xf32>, vector<2x128xf32> -> vector<2x128xf32>
    %c0_3 = arith.constant 0 : index
    %c0_4 = arith.constant 0 : index
    %3 = vector.load %arg4[%c0_3, %c0_4] : memref<3x128xf32, #tpu.memory_space<vmem>>, vector<3x128xf32>
    %4 = vector.extract_strided_slice %3 {offsets = [0, 0], sizes = [1, 128], strides = [1, 1]} : vector<3x128xf32> to vector<1x128xf32>
    %5 = vector.extract_strided_slice %3 {offsets = [1, 0], sizes = [1, 128], strides = [1, 1]} : vector<3x128xf32> to vector<1x128xf32>
    %6 = vector.extract_strided_slice %3 {offsets = [2, 0], sizes = [1, 128], strides = [1, 1]} : vector<3x128xf32> to vector<1x128xf32>
    %7 = vector.broadcast %4 : vector<1x128xf32> to vector<2x128xf32>
    %8 = arith.addf %2, %7 : vector<2x128xf32>
    %c0_5 = arith.constant 0 : index
    %c0_6 = arith.constant 0 : index
    %9 = vector.load %arg3[%c0_5, %c0_6] : memref<128x128xf32, #tpu.memory_space<vmem>>, vector<128x128xf32>
    %cst_7 = arith.constant dense<0.000000e+00> : vector<2x128xf32>
    %10 = tpu.matmul %8, %9, %cst_7 {dimension_numbers = #tpu.dot_dimension_numbers<[1], [0], [0], [1], [0, 0, 1, 1], [], []>} : vector<2x128xf32>, vector<128x128xf32>, vector<2x128xf32> -> vector<2x128xf32>
    %11 = arith.subf %8, %10 : vector<2x128xf32>
    %12 = arith.mulf %11, %11 : vector<2x128xf32>
    %cst_8 = arith.constant dense<0.000000e+00> : vector<2x128xf32>
    %13 = tpu.matmul %12, %9, %cst_8 {dimension_numbers = #tpu.dot_dimension_numbers<[1], [0], [0], [1], [0, 0, 1, 1], [], []>} : vector<2x128xf32>, vector<128x128xf32>, vector<2x128xf32> -> vector<2x128xf32>
    %cst_9 = arith.constant 9.99999974E-6 : f32
    %14 = vector.broadcast %cst_9 : f32 to vector<2x128xf32>
    %15 = arith.addf %13, %14 : vector<2x128xf32>
    %16 = math.rsqrt %15 : vector<2x128xf32>
    %17 = arith.mulf %11, %16 : vector<2x128xf32>
    %18 = vector.broadcast %5 : vector<1x128xf32> to vector<2x128xf32>
    %19 = arith.mulf %17, %18 : vector<2x128xf32>
    %20 = vector.broadcast %6 : vector<1x128xf32> to vector<2x128xf32>
    %21 = arith.addf %19, %20 : vector<2x128xf32>
    %cst_10 = arith.constant 0.000000e+00 : f32
    %22 = vector.broadcast %cst_10 : f32 to vector<2x128xf32>
    %23 = arith.maximumf %21, %22 : vector<2x128xf32>
    %c0_11 = arith.constant 0 : index
    %c0_12 = arith.constant 0 : index
    %24 = vector.load %arg5[%c0_11, %c0_12] : memref<2x128xf32, #tpu.memory_space<vmem>>, vector<2x128xf32>
    tpu.vector_store %arg5[%c0_11, %c0_12], %23 {strides = array<i32>} : memref<2x128xf32, #tpu.memory_space<vmem>>, vector<2x128xf32>,
    return
  }
  func.func @transform_0(%arg0: i32) -> (i32, i32) {
    %c0_i32 = arith.constant 0 : i32
    %c0_i32_0 = arith.constant 0 : i32
    return %arg0, %c0_i32 : i32, i32
  }
  func.func @transform_1(%arg0: i32) -> (i32, i32) {
    %c0_i32 = arith.constant 0 : i32
    %c0_i32_0 = arith.constant 0 : i32
    %c0_i32_1 = arith.constant 0 : i32
    return %c0_i32, %c0_i32_0 : i32, i32
  }
  func.func @transform_2(%arg0: i32) -> (i32, i32) {
    %c0_i32 = arith.constant 0 : i32
    %c0_i32_0 = arith.constant 0 : i32
    %c0_i32_1 = arith.constant 0 : i32
    return %c0_i32, %c0_i32_0 : i32, i32
  }
  func.func @transform_3(%arg0: i32) -> (i32, i32) {
    %c0_i32 = arith.constant 0 : i32
    %c0_i32_0 = arith.constant 0 : i32
    %c0_i32_1 = arith.constant 0 : i32
    return %c0_i32, %c0_i32_0 : i32, i32
  }
  func.func @transform_4(%arg0: i32) -> (i32, i32) {
    %c0_i32 = arith.constant 0 : i32
    %c0_i32_0 = arith.constant 0 : i32
    return %arg0, %c0_i32 : i32, i32
  }
}

</mosaic_0001>

<llo_original>
// kernel: tpu_custom_call.1
$region0: #{tpu_custom_call.1}
  #allocation0 [shape = 'u32[]', space=smem, size = 0x4, offset = 0x4, fixed_abs, tag = 'smem constant byte address 0x4 - core index']
  #allocation1 [shape = 'u32[144,128]{1,0:T(1,128)}', space=vmem, size = 0x12000, scoped, tag = 'internal scratch']
  %s0 = inlined_call_operand.hbm [shape: f32[2,288], index: 0, kind: input, shape index: {}]
  %s1 = inlined_call_operand.hbm [shape: f32[288,128], index: 1, kind: input, shape index: {}]
  %s2 = inlined_call_operand.hbm [shape: f32[128,128], index: 2, kind: input, shape index: {}]
  %s3 = inlined_call_operand.vmem [shape: f32[3,128], index: 3, kind: input, shape index: {}]
  %s4 = inlined_call_operand.hbm [shape: f32[2,128], index: 4, kind: output, shape index: {}]
  %s5 = sld [smem:[#allocation0]]
  $region38: #{tpu_custom_call.1} parent=0
    _
  %s7 = ssub.s32 1, %s5
  %s8 = scalar_select 0, %s7, %s5
  $region1: #{tpu_custom_call.1} parent=0
    #allocation2 [shape = 'u8[3072]{0}', space=vmem, size = 0xc00, scoped, tag = 'input window, operand 0, single buffered']
    #allocation3 [shape = 's32[1]{0}', space=sflag, size = 0x4, scoped, tag = 'scoped memory for tpu_custom_call.1']
    #allocation4 [shape = 's32[1]{0}', space=sflag, size = 0x4, scoped, tag = 'scoped memory for tpu_custom_call.1']
    #allocation5 [shape = 'u8[147456]{0}', space=vmem, size = 0x24000, scoped, tag = 'input window, operand 1, single buffered']
    #allocation6 [shape = 's32[1]{0}', space=sflag, size = 0x4, scoped, tag = 'scoped memory for tpu_custom_call.1']
    #allocation7 [shape = 'u8[65536]{0}', space=vmem, size = 0x10000, scoped, tag = 'input window, operand 2, single buffered']
    #allocation8 [shape = 'u8[1024]{0}', space=vmem, size = 0x400, scoped, tag = 'output window, operand 0, single buffered']
    %9 = vsyncpa [#allocation3], 0
    %10 = vsyncpa [#allocation6], 0
    %11 = vsyncpa [#allocation4], 0
    // Predicated region
    $region2: #{tpu_custom_call.1} parent=1 // pred_check
      _
    $region3: #{tpu_custom_call.1} parent=1 // pred_check_branch
      %13 = sbr.rel (0) target = $region5
    $region4: #{tpu_custom_call.1} parent=1 // pred_region
      %s15 = ssub.s32 96, 96
      %16 = vsyncadd [#allocation3], %s15
      %s18 = sshll.u32 [#allocation2], 4
      %s19 = int_to_ptr.vmem [resolvable:$true] %s18
      %21 = dma.hbm_to_vmem [thread:$0]  %s0, 96, %s19, [#allocation3]
    $region5: #{tpu_custom_call.1} parent=1 // pred_fallthru
      _
    // Predicated region
    $region6: #{tpu_custom_call.1} parent=1 // pred_check
      _
    $region7: #{tpu_custom_call.1} parent=1 // pred_check_branch
      %23 = sbr.rel (0) target = $region9
    $region8: #{tpu_custom_call.1} parent=1 // pred_region
      %s25 = ssub.s32 4608, 4608
      %26 = vsyncadd [#allocation6], %s25
      %s27 = sshll.u32 [#allocation5], 4
      %s28 = int_to_ptr.vmem [resolvable:$true] %s27
      %33 = dma.hbm_to_vmem [thread:$0]  %s1, 4608, %s28, [#allocation6], 128, 128, 8
    $region9: #{tpu_custom_call.1} parent=1 // pred_fallthru
      _
    // Predicated region
    $region10: #{tpu_custom_call.1} parent=1 // pred_check
      _
    $region11: #{tpu_custom_call.1} parent=1 // pred_check_branch
      %35 = sbr.rel (0) target = $region13
    $region12: #{tpu_custom_call.1} parent=1 // pred_region
      %s37 = ssub.s32 2048, 2048
      %38 = vsyncadd [#allocation6], %s37
      %s39 = sshll.u32 [#allocation7], 4
      %s40 = int_to_ptr.vmem [resolvable:$true] %s39
      %45 = dma.hbm_to_vmem [thread:$0]  %s2, 2048, %s40, [#allocation6], 128, 128, 8
    $region13: #{tpu_custom_call.1} parent=1 // pred_fallthru
      _
    // Predicated region
    $region14: #{tpu_custom_call.1} parent=1 // pred_check
      _
    $region15: #{tpu_custom_call.1} parent=1 // pred_check_branch
      %47 = sbr.rel (0) target = $region17
    $region16: #{tpu_custom_call.1} parent=1 // pred_region
      _
    $region17: #{tpu_custom_call.1} parent=1 // pred_fallthru
      _
    // Predicated region
    $region18: #{tpu_custom_call.1} parent=1 // pred_check
      _
    $region19: #{tpu_custom_call.1} parent=1 // pred_check_branch
      %49 = sbr.rel (0) target = $region21
    $region20: #{tpu_custom_call.1} parent=1 // pred_region
      %50 = dma.done [#allocation3], 96
    $region21: #{tpu_custom_call.1} parent=1 // pred_fallthru
      _
    // Predicated region
    $region22: #{tpu_custom_call.1} parent=1 // pred_check
      _
    $region23: #{tpu_custom_call.1} parent=1 // pred_check_branch
      %52 = sbr.rel (0) target = $region25
    $region24: #{tpu_custom_call.1} parent=1 // pred_region
      %53 = dma.done [#allocation6], 4608
    $region25: #{tpu_custom_call.1} parent=1 // pred_fallthru
      _
    // Predicated region
    $region26: #{tpu_custom_call.1} parent=1 // pred_check
      _
    $region27: #{tpu_custom_call.1} parent=1 // pred_check_branch
      %55 = sbr.rel (0) target = $region29
    $region28: #{tpu_custom_call.1} parent=1 // pred_region
      %56 = dma.done [#allocation6], 2048
    $region29: #{tpu_custom_call.1} parent=1 // pred_fallthru
      _
    %v57 = vld [vmem:[#allocation2] sm:$0x3f]
    %v58 = vld [vmem:[#allocation5] sm:$0xff]
    %v59 = vld [vmem:[#allocation5 + $0x8] sm:$0xff]
    %v60 = vld [vmem:[#allocation5 + $0x10] sm:$0xff]
    %v61 = vld [vmem:[#allocation5 + $0x18] sm:$0xff]
    %v62 = vld [vmem:[#allocation5 + $0x20] sm:$0xff]
    %v63 = vld [vmem:[#allocation5 + $0x28] sm:$0xff]
    %v64 = vld [vmem:[#allocation5 + $0x30] sm:$0xff]
    %v65 = vld [vmem:[#allocation5 + $0x38] sm:$0xff]
    %v66 = vld [vmem:[#allocation5 + $0x40] sm:$0xff]
    %v67 = vld [vmem:[#allocation5 + $0x48] sm:$0xff]
    %v68 = vld [vmem:[#allocation5 + $0x50] sm:$0xff]
    %v69 = vld [vmem:[#allocation5 + $0x58] sm:$0xff]
    %v70 = vld [vmem:[#allocation5 + $0x60] sm:$0xff]
    %v71 = vld [vmem:[#allocation5 + $0x68] sm:$0xff]
    %v72 = vld [vmem:[#allocation5 + $0x70] sm:$0xff]
    %v73 = vld [vmem:[#allocation5 + $0x78] sm:$0xff]
    %v74 = vld [vmem:[#allocation5 + $0x80] sm:$0xff]
    %v75 = vld [vmem:[#allocation5 + $0x88] sm:$0xff]
    %v76 = vld [vmem:[#allocation5 + $0x90] sm:$0xff]
    %v77 = vld [vmem:[#allocation5 + $0x98] sm:$0xff]
    %v78 = vld [vmem:[#allocation5 + $0xa0] sm:$0xff]
    %v79 = vld [vmem:[#allocation5 + $0xa8] sm:$0xff]
    %v80 = vld [vmem:[#allocation5 + $0xb0] sm:$0xff]
    %v81 = vld [vmem:[#allocation5 + $0xb8] sm:$0xff]
    %v82 = vld [vmem:[#allocation5 + $0xc0] sm:$0xff]
    %v83 = vld [vmem:[#allocation5 + $0xc8] sm:$0xff]
    %v84 = vld [vmem:[#allocation5 + $0xd0] sm:$0xff]
    %v85 = vld [vmem:[#allocation5 + $0xd8] sm:$0xff]
    %v86 = vld [vmem:[#allocation5 + $0xe0] sm:$0xff]
    %v87 = vld [vmem:[#allocation5 + $0xe8] sm:$0xff]
    %v88 = vld [vmem:[#allocation5 + $0xf0] sm:$0xff]
    %v89 = vld [vmem:[#allocation5 + $0xf8] sm:$0xff]
    %v90 = vld [vmem:[#allocation5 + $0x100] sm:$0xff]
    %v91 = vld [vmem:[#allocation5 + $0x108] sm:$0xff]
    %v92 = vld [vmem:[#allocation5 + $0x110] sm:$0xff]
    %v93 = vld [vmem:[#allocation5 + $0x118] sm:$0xff]
    %v94 = vld [vmem:[%s3] sm:$0x7]
    %v95 = vlaneseq
    %v96 = vshrl.u32 %v95, 7
    %v97 = vsub.s32 0, %v96
    %v98 = vrot.slane %v94, %v97
    %v100 = vcombine.high %v57, %v57
    %v102 = vunpack.c.l.s4 1983009808
    %v103 = vunpack.c.0.s8 %v102
    %v104 = vlaneseq
    %v105 = vshrl.u32 %v104, 7
    %v106 = vsub.s32 %v103, %v105
    %v107 = vrot.slane %v57, %v106
    %v109 = vunpack.c.l.s4 1983009808
    %v110 = vunpack.c.0.s8 %v109
    %v111 = vlaneseq
    %v112 = vshrl.u32 %v111, 7
    %v113 = vsub.s32 %v110, %v112
    %v114 = vrot.slane %v100, %v113
    %v115 = vcombine.high %v107, %v107
    %vm118 = vcmask 261120
    %v119 = vsel %vm118, %v114, 0
    %121 = vmatprep.subr.mxu0 0.0
    %122 = vmatpush1.msra.mxu0 %v58
    %123 = vmatprep.subr.mxu0 0.0
    %124 = vmatpush1.msra.mxu0 %v59
    %125 = vmatprep.subr.mxu0 0.0
    %126 = vmatpush1.msra.mxu0 %v60
    %127 = vmatprep.subr.mxu0 0.0
    %128 = vmatpush1.msra.mxu0 %v61
    %129 = vmatprep.subr.mxu0 0.0
    %130 = vmatpush1.msra.mxu0 %v62
    %131 = vmatprep.subr.mxu0 0.0
    %132 = vmatpush1.msra.mxu0 %v63
    %133 = vmatprep.subr.mxu0 0.0
    %134 = vmatpush1.msra.mxu0 %v64
    %135 = vmatprep.subr.mxu0 0.0
    %136 = vmatpush1.msra.mxu0 %v65
    %137 = vmatprep.subr.mxu0 0.0
    %138 = vmatpush1.msra.mxu0 %v66
    %139 = vmatprep.subr.mxu0 0.0
    %140 = vmatpush1.msra.mxu0 %v67
    %141 = vmatprep.subr.mxu0 0.0
    %142 = vmatpush1.msra.mxu0 %v68
    %143 = vmatprep.subr.mxu0 0.0
    %144 = vmatpush1.msra.mxu0 %v69
    %145 = vmatprep.subr.mxu0 0.0
    %146 = vmatpush1.msra.mxu0 %v70
    %147 = vmatprep.subr.mxu0 0.0
    %148 = vmatpush1.msra.mxu0 %v71
    %149 = vmatprep.subr.mxu0 0.0
    %150 = vmatpush1.msra.mxu0 %v72
    %151 = vmatprep.subr.mxu0 0.0
    %152 = vmatpush1.msra.mxu0 %v73
    %153 = vmatprep.subr.mxu0 0.0
    %154 = vmatpush1.msra.mxu0 %v74
    %155 = vmatprep.subr.mxu0 0.0
    %156 = vmatpush1.msra.mxu0 %v75
    %157 = vmatprep.subr.mxu0 0.0
    %158 = vmatpush1.msra.mxu0 %v76
    %159 = vmatprep.subr.mxu0 0.0
    %160 = vmatpush1.msra.mxu0 %v77
    %161 = vmatprep.subr.mxu0 0.0
    %162 = vmatpush1.msra.mxu0 %v78
    %163 = vmatprep.subr.mxu0 0.0
    %164 = vmatpush1.msra.mxu0 %v79
    %165 = vmatprep.subr.mxu0 0.0
    %166 = vmatpush1.msra.mxu0 %v80
    %167 = vmatprep.subr.mxu0 0.0
    %168 = vmatpush1.msra.mxu0 %v81
    %169 = vmatprep.subr.mxu0 0.0
    %170 = vmatpush1.msra.mxu0 %v82
    %171 = vmatprep.subr.mxu0 0.0
    %172 = vmatpush1.msra.mxu0 %v83
    %173 = vmatprep.subr.mxu0 0.0
    %174 = vmatpush1.msra.mxu0 %v84
    %175 = vmatprep.subr.mxu0 0.0
    %176 = vmatpush1.msra.mxu0 %v85
    %177 = vmatprep.subr.mxu0 0.0
    %178 = vmatpush1.msra.mxu0 %v86
    %179 = vmatprep.subr.mxu0 0.0
    %180 = vmatpush1.msra.mxu0 %v87
    %181 = vmatprep.subr.mxu0 0.0
    %182 = vmatpush1.msra.mxu0 %v88
    %183 = vmatprep.subr.mxu0 0.0
    %184 = vmatpush1.msra.mxu0 %v89
    %185 = vmatprep.mubr.f32.mxu0 %v115
    %186 = vmatmul.mubr.f32.gmra.mrb[0].mxu0 %v107
    %v187 = vpop.f32.mrb[0].mxu0
    %v188 = vadd.f32 %v98, %v187
    %v189 = vpop.f32.mrb[0].mxu0
    %190 = vdwg.mxu0
    %191 = vmatprep.subr.mxu0 0.0
    %192 = vmatpush1.msra.mxu0 %v90
    %193 = vmatprep.subr.mxu0 0.0
    %194 = vmatpush1.msra.mxu0 %v91
    %195 = vmatprep.subr.mxu0 0.0
    %196 = vmatpush1.msra.mxu0 %v92
    %197 = vmatprep.subr.mxu0 0.0
    %198 = vmatpush1.msra.mxu0 %v93
    %199 = vmatprep.subr.mxu0 0.0
    %200 = vmatpush1.msra.mxu0 0.0
    %201 = vmatprep.subr.mxu0 0.0
    %202 = vmatpush1.msra.mxu0 0.0
    %203 = vmatprep.subr.mxu0 0.0
    %204 = vmatpush1.msra.mxu0 0.0
    %205 = vmatprep.subr.mxu0 0.0
    %206 = vmatpush1.msra.mxu0 0.0
    %207 = vmatprep.subr.mxu0 0.0
    %208 = vmatpush1.msra.mxu0 0.0
    %209 = vmatprep.subr.mxu0 0.0
    %210 = vmatpush1.msra.mxu0 0.0
    %211 = vmatprep.subr.mxu0 0.0
    %212 = vmatpush1.msra.mxu0 0.0
    %213 = vmatprep.subr.mxu0 0.0
    %214 = vmatpush1.msra.mxu0 0.0
    %215 = vmatprep.subr.mxu0 0.0
    %216 = vmatpush1.msra.mxu0 0.0
    %217 = vmatprep.subr.mxu0 0.0
    %218 = vmatpush1.msra.mxu0 0.0
    %219 = vmatprep.subr.mxu0 0.0
    %220 = vmatpush1.msra.mxu0 0.0
    %221 = vmatprep.subr.mxu0 0.0
    %222 = vmatpush1.msra.mxu0 0.0
    %223 = vmatprep.subr.mxu0 0.0
    %224 = vmatpush1.msra.mxu0 0.0
    %225 = vmatprep.subr.mxu0 0.0
    %226 = vmatpush1.msra.mxu0 0.0
    %227 = vmatprep.subr.mxu0 0.0
    %228 = vmatpush1.msra.mxu0 0.0
    %229 = vmatprep.subr.mxu0 0.0
    %230 = vmatpush1.msra.mxu0 0.0
    %231 = vmatprep.subr.mxu0 0.0
    %232 = vmatpush1.msra.mxu0 0.0
    %233 = vmatprep.subr.mxu0 0.0
    %234 = vmatpush1.msra.mxu0 0.0
    %235 = vmatprep.subr.mxu0 0.0
    %236 = vmatpush1.msra.mxu0 0.0
    %237 = vmatprep.subr.mxu0 0.0
    %238 = vmatpush1.msra.mxu0 0.0
    %239 = vmatprep.subr.mxu0 0.0
    %240 = vmatpush1.msra.mxu0 0.0
    %241 = vmatprep.subr.mxu0 0.0
    %242 = vmatpush1.msra.mxu0 0.0
    %243 = vmatprep.subr.mxu0 0.0
    %244 = vmatpush1.msra.mxu0 0.0
    %245 = vmatprep.subr.mxu0 0.0
    %246 = vmatpush1.msra.mxu0 0.0
    %247 = vmatprep.subr.mxu0 0.0
    %248 = vmatpush1.msra.mxu0 0.0
    %249 = vmatprep.subr.mxu0 0.0
    %250 = vmatpush1.msra.mxu0 0.0
    %251 = vmatprep.subr.mxu0 0.0
    %252 = vmatpush1.msra.mxu0 0.0
    %253 = vmatprep.subr.mxu0 0.0
    %254 = vmatpush1.msra.mxu0 0.0
    %255 = vmatprep.mubr.f32.mxu0 0.0
    %256 = vmatmul.mubr.f32.gmra.mrb[0].mxu0 %v119
    %v257 = vpop.f32.mrb[0].mxu0
    %v258 = vadd.f32 %v188, %v257
    %v259 = vpop.f32.mrb[0].mxu0
    %260 = vdwg.mxu0
    %v261 = vld [vmem:[#allocation7] sm:$0xff]
    %v262 = vld [vmem:[#allocation7 + $0x8] sm:$0xff]
    %v263 = vld [vmem:[#allocation7 + $0x10] sm:$0xff]
    %v264 = vld [vmem:[#allocation7 + $0x18] sm:$0xff]
    %v265 = vld [vmem:[#allocation7 + $0x20] sm:$0xff]
    %v266 = vld [vmem:[#allocation7 + $0x28] sm:$0xff]
    %v267 = vld [vmem:[#allocation7 + $0x30] sm:$0xff]
    %v268 = vld [vmem:[#allocation7 + $0x38] sm:$0xff]
    %v269 = vld [vmem:[#allocation7 + $0x40] sm:$0xff]
    %v270 = vld [vmem:[#allocation7 + $0x48] sm:$0xff]
    %v271 = vld [vmem:[#allocation7 + $0x50] sm:$0xff]
    %v272 = vld [vmem:[#allocation7 + $0x58] sm:$0xff]
    %v273 = vld [vmem:[#allocation7 + $0x60] sm:$0xff]
    %v274 = vld [vmem:[#allocation7 + $0x68] sm:$0xff]
    %v275 = vld [vmem:[#allocation7 + $0x70] sm:$0xff]
    %v276 = vld [vmem:[#allocation7 + $0x78] sm:$0xff]
    %277 = vmatprep.subr.mxu0 0.0
    %278 = vmatpush1.msra.mxu0 %v261
    %279 = vmatprep.subr.mxu0 0.0
    %280 = vmatpush1.msra.mxu0 %v262
    %281 = vmatprep.subr.mxu0 0.0
    %282 = vmatpush1.msra.mxu0 %v263
    %283 = vmatprep.subr.mxu0 0.0
    %284 = vmatpush1.msra.mxu0 %v264
    %285 = vmatprep.subr.mxu0 0.0
    %286 = vmatpush1.msra.mxu0 %v265
    %287 = vmatprep.subr.mxu0 0.0
    %288 = vmatpush1.msra.mxu0 %v266
    %289 = vmatprep.subr.mxu0 0.0
    %290 = vmatpush1.msra.mxu0 %v267
    %291 = vmatprep.subr.mxu0 0.0
    %292 = vmatpush1.msra.mxu0 %v268
    %293 = vmatprep.subr.mxu0 0.0
    %294 = vmatpush1.msra.mxu0 %v269
    %295 = vmatprep.subr.mxu0 0.0
    %296 = vmatpush1.msra.mxu0 %v270
    %297 = vmatprep.subr.mxu0 0.0
    %298 = vmatpush1.msra.mxu0 %v271
    %299 = vmatprep.subr.mxu0 0.0
    %300 = vmatpush1.msra.mxu0 %v272
    %301 = vmatprep.subr.mxu0 0.0
    %302 = vmatpush1.msra.mxu0 %v273
    %303 = vmatprep.subr.mxu0 0.0
    %304 = vmatpush1.msra.mxu0 %v274
    %305 = vmatprep.subr.mxu0 0.0
    %306 = vmatpush1.msra.mxu0 %v275
    %307 = vmatprep.subr.mxu0 0.0
    %308 = vmatpush1.msra.mxu0 %v276
    %309 = vmatprep.subr.mxu0 0.0
    %310 = vmatpush1.msra.mxu0 0.0
    %311 = vmatprep.subr.mxu0 0.0
    %312 = vmatpush1.msra.mxu0 0.0
    %313 = vmatprep.subr.mxu0 0.0
    %314 = vmatpush1.msra.mxu0 0.0
    %315 = vmatprep.subr.mxu0 0.0
    %316 = vmatpush1.msra.mxu0 0.0
    %317 = vmatprep.subr.mxu0 0.0
    %318 = vmatpush1.msra.mxu0 0.0
    %319 = vmatprep.subr.mxu0 0.0
    %320 = vmatpush1.msra.mxu0 0.0
    %321 = vmatprep.subr.mxu0 0.0
    %322 = vmatpush1.msra.mxu0 0.0
    %323 = vmatprep.subr.mxu0 0.0
    %324 = vmatpush1.msra.mxu0 0.0
    %325 = vmatprep.subr.mxu0 0.0
    %326 = vmatpush1.msra.mxu0 0.0
    %327 = vmatprep.subr.mxu0 0.0
    %328 = vmatpush1.msra.mxu0 0.0
    %329 = vmatprep.subr.mxu0 0.0
    %330 = vmatpush1.msra.mxu0 0.0
    %331 = vmatprep.subr.mxu0 0.0
    %332 = vmatpush1.msra.mxu0 0.0
    %333 = vmatprep.subr.mxu0 0.0
    %334 = vmatpush1.msra.mxu0 0.0
    %335 = vmatprep.subr.mxu0 0.0
    %336 = vmatpush1.msra.mxu0 0.0
    %337 = vmatprep.subr.mxu0 0.0
    %338 = vmatpush1.msra.mxu0 0.0
    %339 = vmatprep.subr.mxu0 0.0
    %340 = vmatpush1.msra.mxu0 0.0
    %341 = vmatprep.mubr.f32.mxu0 0.0
    %342 = vmatmul.mubr.f32.gmra.mrb[0].mxu0 %v258
    %v343 = vpop.f32.mrb[0].mxu0
    %v344 = vadd.f32 0.0, %v343
    %v345 = vpop.f32.mrb[0].mxu0
    %346 = vdwg.mxu0
    %v347 = vsub.f32 %v258, %v344
    %v348 = vmul.f32 %v347, %v347
    %349 = vmatprep.subr.mxu0 0.0
    %350 = vmatpush1.msra.mxu0 %v261
    %351 = vmatprep.subr.mxu0 0.0
    %352 = vmatpush1.msra.mxu0 %v262
    %353 = vmatprep.subr.mxu0 0.0
    %354 = vmatpush1.msra.mxu0 %v263
    %355 = vmatprep.subr.mxu0 0.0
    %356 = vmatpush1.msra.mxu0 %v264
    %357 = vmatprep.subr.mxu0 0.0
    %358 = vmatpush1.msra.mxu0 %v265
    %359 = vmatprep.subr.mxu0 0.0
    %360 = vmatpush1.msra.mxu0 %v266
    %361 = vmatprep.subr.mxu0 0.0
    %362 = vmatpush1.msra.mxu0 %v267
    %363 = vmatprep.subr.mxu0 0.0
    %364 = vmatpush1.msra.mxu0 %v268
    %365 = vmatprep.subr.mxu0 0.0
    %366 = vmatpush1.msra.mxu0 %v269
    %367 = vmatprep.subr.mxu0 0.0
    %368 = vmatpush1.msra.mxu0 %v270
    %369 = vmatprep.subr.mxu0 0.0
    %370 = vmatpush1.msra.mxu0 %v271
    %371 = vmatprep.subr.mxu0 0.0
    %372 = vmatpush1.msra.mxu0 %v272
    %373 = vmatprep.subr.mxu0 0.0
    %374 = vmatpush1.msra.mxu0 %v273
    %375 = vmatprep.subr.mxu0 0.0
    %376 = vmatpush1.msra.mxu0 %v274
    %377 = vmatprep.subr.mxu0 0.0
    %378 = vmatpush1.msra.mxu0 %v275
    %379 = vmatprep.subr.mxu0 0.0
    %380 = vmatpush1.msra.mxu0 %v276
    %381 = vmatprep.subr.mxu0 0.0
    %382 = vmatpush1.msra.mxu0 0.0
    %383 = vmatprep.subr.mxu0 0.0
    %384 = vmatpush1.msra.mxu0 0.0
    %385 = vmatprep.subr.mxu0 0.0
    %386 = vmatpush1.msra.mxu0 0.0
    %387 = vmatprep.subr.mxu0 0.0
    %388 = vmatpush1.msra.mxu0 0.0
    %389 = vmatprep.subr.mxu0 0.0
    %390 = vmatpush1.msra.mxu0 0.0
    %391 = vmatprep.subr.mxu0 0.0
    %392 = vmatpush1.msra.mxu0 0.0
    %393 = vmatprep.subr.mxu0 0.0
    %394 = vmatpush1.msra.mxu0 0.0
    %395 = vmatprep.subr.mxu0 0.0
    %396 = vmatpush1.msra.mxu0 0.0
    %397 = vmatprep.subr.mxu0 0.0
    %398 = vmatpush1.msra.mxu0 0.0
    %399 = vmatprep.subr.mxu0 0.0
    %400 = vmatpush1.msra.mxu0 0.0
    %401 = vmatprep.subr.mxu0 0.0
    %402 = vmatpush1.msra.mxu0 0.0
    %403 = vmatprep.subr.mxu0 0.0
    %404 = vmatpush1.msra.mxu0 0.0
    %405 = vmatprep.subr.mxu0 0.0
    %406 = vmatpush1.msra.mxu0 0.0
    %407 = vmatprep.subr.mxu0 0.0
    %408 = vmatpush1.msra.mxu0 0.0
    %409 = vmatprep.subr.mxu0 0.0
    %410 = vmatpush1.msra.mxu0 0.0
    %411 = vmatprep.subr.mxu0 0.0
    %412 = vmatpush1.msra.mxu0 0.0
    %413 = vmatprep.mubr.f32.mxu0 0.0
    %414 = vmatmul.mubr.f32.gmra.mrb[0].mxu0 %v348
    %v415 = vpop.f32.mrb[0].mxu0
    %v416 = vadd.f32 1e-05, %v415
    %v417 = vpop.f32.mrb[0].mxu0
    %418 = vdwg.mxu0
    %v419 = vrsqrt.pop %v416
    %v420 = vmul.f32 %v347, %v419
    %v421 = vlaneseq
    %v422 = vshrl.u32 %v421, 7
    %v423 = vsub.s32 1, %v422
    %v424 = vrot.slane %v94, %v423
    %v425 = vmul.f32 %v420, %v424
    %v426 = vlaneseq
    %v427 = vshrl.u32 %v426, 7
    %v428 = vsub.s32 2, %v427
    %v429 = vrot.slane %v94, %v428
    %v430 = vadd.f32 %v425, %v429
    %v431 = vmax.f32 %v430, 0.0
    %432 = vst [vmem:[#allocation8] sm:$0x3] %v431
    // Predicated region
    $region30: #{tpu_custom_call.1} parent=1 // pred_check
      _
    $region31: #{tpu_custom_call.1} parent=1 // pred_check_branch
      %434 = sbr.rel (0) target = $region33
    $region32: #{tpu_custom_call.1} parent=1 // pred_region
      %s436 = ssub.s32 32, 32
      %437 = vsyncadd [#allocation4], %s436
      %s439 = sshll.u32 [#allocation8], 4
      %s440 = int_to_ptr.vmem [resolvable:$true] %s439
      %442 = dma.vmem_to_hbm [thread:$0]  %s440, 32, %s4, [#allocation4]
    $region33: #{tpu_custom_call.1} parent=1 // pred_fallthru
      _
    // Predicated region
    $region34: #{tpu_custom_call.1} parent=1 // pred_check
      _
    $region35: #{tpu_custom_call.1} parent=1 // pred_check_branch
      %444 = sbr.rel (0) target = $region37
    $region36: #{tpu_custom_call.1} parent=1 // pred_region
      %445 = dma.done [#allocation4], 32
    $region37: #{tpu_custom_call.1} parent=1 // pred_fallthru
      _
    %446 = vsyncpa [#allocation3], 1
    %447 = vsyncpa [#allocation6], 1
    %448 = vsyncpa [#allocation4], 1

</llo_original>
